<compile_context>
chip_gen: v7x
topology: tpu7x:2x2x1
jax: 0.10.0
libtpu: 0.0.40
codegen_flags: <defaults>
</compile_context>

<pallas_src>
import functools
import math

import jax
import jax.numpy as jnp
from jax.experimental import pallas as pl
from jax.experimental.pallas import tpu as pltpu

_LANES = 128
_TARGET_BLOCK_BYTES = 1 << 20     # ~1 MiB per input block (storage dtype, lane-padded)
_MAX_LANE_PAD = 32768             # keep even an 8-row f32 block <= 1 MiB


def _cdiv(a, b):
    return -(-a // b)


def _num_tensorcores():
    """Best-effort TensorCore count (e.g. 2 on v7x-class parts); falls back to 1."""
    candidates = []
    try:
        info = pltpu.get_tpu_info()
        for name in ("num_cores", "core_count", "num_tensor_cores",
                     "tensorcore_count", "num_tensorcores"):
            v = getattr(info, name, None)
            if v is not None:
                candidates.append(v)
    except Exception:
        pass
    try:
        dev = jax.local_devices()[0]
        for name in ("num_cores", "core_count"):
            v = getattr(dev, name, None)
            if v is not None:
                candidates.append(v)
    except Exception:
        pass
    for v in candidates:
        try:
            v = int(v)
        except Exception:
            continue
        if 1 < v <= 8:          # sanity: reject "chips in slice"-style values
            return v
    return 1


def _choose_view(shape):
    """Pick a copy-free (bitcast) 2-D view (R, C) of a row-major array.

    Returns None if no lane-friendly free view exists (caller zero-pads)."""
    total = math.prod(shape)
    if total >= _LANES and total % _LANES == 0:
        return (total // _LANES, _LANES)          # perfect lane density, free reshape
    best_key, best_view = None, None
    c = 1
    for d in reversed(shape):                     # merge trailing dims (always free)
        c *= int(d)
        r = total // c
        if c < _LANES or r < 8:
            continue
        lane_pad = _LANES * _cdiv(c, _LANES)
        if lane_pad > _MAX_LANE_PAD:
            continue
        key = (c / lane_pad, -c)                  # maximize lane efficiency, prefer small C
        if best_key is None or key > best_key:
            best_key, best_view = key, (r, c)
    return best_view


def _wbce_kernel(x_ref, g_ref, w_ref, out_ref, acc_ref, *,
                 block_rows, total_rows, steps_per_split, exact):
    """Accumulate per-lane partial sums of (loss * w) and w into VMEM scratch."""
    s = pl.program_id(0)                          # parallel split axis (TensorCores)
    i = pl.program_id(1)                          # sequential reduction axis

    @pl.when(i == 0)
    def _init():
        acc_ref[...] = jnp.zeros_like(acc_ref)

    x = x_ref[...].astype(jnp.float32)
    g = g_ref[...].astype(jnp.float32)
    w = w_ref[...].astype(jnp.float32)

    # Numerically stable BCE-with-logits: max(x,0) - x*gt + log1p(exp(-|x|))
    loss = jnp.maximum(x, 0.0) - x * g + jnp.log1p(jnp.exp(-jnp.abs(x)))
    lw = loss * w

    if exact:
        # Grid tiles the row range exactly: no masking anywhere.
        acc_ref[0:1, :] += jnp.sum(lw, axis=0, keepdims=True)
        acc_ref[1:2, :] += jnp.sum(w, axis=0, keepdims=True)
    else:
        row0 = (s * steps_per_split + i) * block_rows       # unclamped block start
        full = row0 + block_rows <= total_rows

        @pl.when(full)
        def _fast():                               # steady state: no mask ops at all
            acc_ref[0:1, :] += jnp.sum(lw, axis=0, keepdims=True)
            acc_ref[1:2, :] += jnp.sum(w, axis=0, keepdims=True)

        @pl.when(jnp.logical_not(full))
        def _masked():                             # only the overhang/duplicate block
            rid = jax.lax.broadcasted_iota(jnp.int32, (block_rows, 1), 0)
            valid = (row0 + rid) < total_rows
            # where()-based (not multiply) so garbage/NaN rows cannot leak in.
            lw_m = jnp.where(valid, lw, 0.0)
            w_m = jnp.where(valid, w, 0.0)
            acc_ref[0:1, :] += jnp.sum(lw_m, axis=0, keepdims=True)
            acc_ref[1:2, :] += jnp.sum(w_m, axis=0, keepdims=True)

    @pl.when(i == steps_per_split - 1)
    def _flush():                                  # write the output block once
        out_ref[...] = acc_ref[...]


def weighted_bce_loss_2d(logits, labels, weights):
    """Scalar weighted BCE-with-logits loss: sum(loss * w) / sum(w)."""
    shape = tuple(logits.shape)
    total = math.prod(shape)
    if total == 0:
        return jnp.float32(0.0) / jnp.float32(0.0)     # matches reference (NaN)

    view = _choose_view(shape)
    if view is not None:
        R, C = view
        x2 = logits.reshape(R, C)                  # free bitcast reshapes (row-major)
        g2 = labels.reshape(R, C)
        w2 = weights.reshape(R, C)
    else:
        # Tiny / pathological shape: zero-pad flat arrays to a multiple of 128.
        # Padded weights are 0 -> exact result; copy cost is negligible here.
        R = _cdiv(total, _LANES)
        C = _LANES
        pad = R * _LANES - total

        def _pad(a):
            return jnp.pad(a.reshape(-1), (0, pad)).reshape(R, C)

        x2, g2, w2 = _pad(logits), _pad(labels), _pad(weights)

    lane_pad = _LANES * _cdiv(C, _LANES)
    itemsize = max(a.dtype.itemsize for a in (x2, g2, w2))
    row_bytes = lane_pad * itemsize

    # Dtype-aware block sizing: ~1 MiB per input block (all-f32: 2048x128 rows,
    # all-bf16: 4096x128).  Keeps 3 inputs x 2 pipeline buffers + f32 intermediates
    # well under default scoped VMEM on v5e/v6e/v7x.
    if R <= 8 or R * row_bytes <= _TARGET_BLOCK_BYTES:
        block_rows = R
    else:
        block_rows = max(8, min((_TARGET_BLOCK_BYTES // row_bytes) // 8 * 8,
                                (R // 8) * 8))
    n_blocks = _cdiv(R, block_rows)

    # Engage the parallel split only when >1 TensorCore is actually present.
    n_cores = _num_tensorcores()
    n_split = n_cores if (n_cores > 1 and n_blocks >= n_cores) else 1
    steps = _cdiv(n_blocks, n_split)
    exact = (n_split * steps * block_rows) == R    # static: skip mask branch entirely

    def in_index(s, i):
        # Clamp: a redundant trailing step re-reads the last real block; its
        # contribution is fully masked inside the kernel (row0 >= total_rows).
        return (jnp.minimum(s * steps + i, n_blocks - 1), 0)

    in_spec = pl.BlockSpec((block_rows, C), in_index)
    out_spec = pl.BlockSpec((None, 2, C), lambda s, i: (s, 0, 0))

    kernel = functools.partial(
        _wbce_kernel, block_rows=block_rows, total_rows=R,
        steps_per_split=steps, exact=exact)

    partial_sums = pl.pallas_call(
        kernel,
        out_shape=jax.ShapeDtypeStruct((n_split, 2, C), jnp.float32),
        grid_spec=pltpu.PrefetchScalarGridSpec(
            num_scalar_prefetch=0,
            grid=(n_split, steps),
            in_specs=[in_spec, in_spec, in_spec],
            out_specs=out_spec,
            scratch_shapes=[pltpu.VMEM((2, C), jnp.float32)],
        ),
        compiler_params=pltpu.CompilerParams(
            dimension_semantics=("parallel", "arbitrary")),
    )(x2, g2, w2)

    sums = jnp.sum(partial_sums, axis=(0, 2))      # single cross-lane reduce -> (2,)
    return sums[0] / sums[1]


def _reference(logits, labels, weights):
    x = jnp.ravel(logits).astype(jnp.float32)
    g = jnp.ravel(labels).astype(jnp.float32)
    w = jnp.ravel(weights).astype(jnp.float32)
    loss = jnp.maximum(x, 0.0) - x * g + jnp.log1p(jnp.exp(-jnp.abs(x)))
    return jnp.sum(loss * w) / jnp.sum(w)


if __name__ == "__main__":
    key = jax.random.PRNGKey(0)
    loss_fn = jax.jit(weighted_bce_loss_2d)

    shapes = [
        (2, 4, 16, 16),     # 128-aligned total -> free (16,128) view, single block
        (2, 4, 200, 181),   # misaligned total  -> free (1600,181) view, masked last block
        (3, 5, 7),          # tiny shape        -> zero-pad fallback path
    ]
    for shape in shapes:
        k1, k2, k3, key = jax.random.split(key, 4)
        logits = jax.random.normal(k1, shape, dtype=jnp.float32)
        labels = (jax.random.uniform(k2, shape) > 0.5).astype(jnp.float32)
        weights = jax.random.uniform(k3, shape, dtype=jnp.float32) + 0.1

        out = jax.block_until_ready(loss_fn(logits, labels, weights))
        ref = jax.block_until_ready(_reference(logits, labels, weights))
        assert jnp.allclose(out, ref, rtol=1e-4, atol=1e-5), (shape, out, ref)

    print("KERNEL_OK")
</pallas_src>

<mosaic_0001>
module attributes {stable_mosaic.version = 11 : i64} {
  func.func @_wbce_kernel(%arg0: i32, %arg1: i32, %arg2: memref<16x128xf32, #tpu.memory_space<vmem>>, %arg3: memref<16x128xf32, #tpu.memory_space<vmem>>, %arg4: memref<16x128xf32, #tpu.memory_space<vmem>>, %arg5: memref<1x2x128xf32, #tpu.memory_space<vmem>>, %arg6: memref<2x128xf32, #tpu.memory_space<vmem>>) attributes {dimension_semantics = [#tpu.dimension_semantics<parallel>, #tpu.dimension_semantics<arbitrary>], iteration_bounds = array<i64: 1, 1>, scalar_prefetch = 0 : i64, scratch_operands = 1 : i64, tpu.core_type = #tpu.core_type<tc>, window_params = [{transform_indices = @transform_0, window_bounds = array<i64: 16, 128>}, {transform_indices = @transform_1, window_bounds = array<i64: 16, 128>}, {transform_indices = @transform_2, window_bounds = array<i64: 16, 128>}, {transform_indices = @transform_3, window_bounds = array<i64: 1, 2, 128>}]} {
    %c0_i32 = arith.constant 0 : i32
    %0 = arith.cmpi eq, %arg1, %c0_i32 : i32
    %1 = arith.extui %0 : i1 to i32
    %c0_i32_0 = arith.constant 0 : i32
    %2 = arith.cmpi ne, %1, %c0_i32_0 : i32
    scf.if %2 {
      %cst_18 = arith.constant 0.000000e+00 : f32
      %30 = vector.broadcast %cst_18 : f32 to vector<2x128xf32>
      %c0_19 = arith.constant 0 : index
      %c0_20 = arith.constant 0 : index
      %31 = vector.load %arg6[%c0_19, %c0_20] : memref<2x128xf32, #tpu.memory_space<vmem>>, vector<2x128xf32>
      tpu.vector_store %arg6[%c0_19, %c0_20], %30 {strides = array<i32>} : memref<2x128xf32, #tpu.memory_space<vmem>>, vector<2x128xf32>,
    } else {
    }
    %c0 = arith.constant 0 : index
    %c0_1 = arith.constant 0 : index
    %3 = vector.load %arg2[%c0, %c0_1] : memref<16x128xf32, #tpu.memory_space<vmem>>, vector<16x128xf32>
    %c0_2 = arith.constant 0 : index
    %c0_3 = arith.constant 0 : index
    %4 = vector.load %arg3[%c0_2, %c0_3] : memref<16x128xf32, #tpu.memory_space<vmem>>, vector<16x128xf32>
    %c0_4 = arith.constant 0 : index
    %c0_5 = arith.constant 0 : index
    %5 = vector.load %arg4[%c0_4, %c0_5] : memref<16x128xf32, #tpu.memory_space<vmem>>, vector<16x128xf32>
    %cst = arith.constant 0.000000e+00 : f32
    %6 = vector.broadcast %cst : f32 to vector<16x128xf32>
    %7 = arith.maximumf %3, %6 : vector<16x128xf32>
    %8 = arith.mulf %3, %4 : vector<16x128xf32>
    %9 = arith.subf %7, %8 : vector<16x128xf32>
    %10 = math.absf %3 : vector<16x128xf32>
    %cst_6 = arith.constant 0.000000e+00 : f32
    %11 = vector.broadcast %cst_6 : f32 to vector<16x128xf32>
    %12 = arith.subf %11, %10 : vector<16x128xf32>
    %13 = math.exp %12 : vector<16x128xf32>
    %14 = math.log1p %13 : vector<16x128xf32>
    %15 = arith.addf %9, %14 : vector<16x128xf32>
    %16 = arith.mulf %15, %5 : vector<16x128xf32>
    %c0_7 = arith.constant 0 : index
    %c0_8 = arith.constant 0 : index
    %17 = vector.load %arg6[%c0_7, %c0_8] : memref<2x128xf32, #tpu.memory_space<vmem>>, vector<1x128xf32>
    %cst_9 = arith.constant dense<0.000000e+00> : vector<128xf32>
    %18 = vector.multi_reduction <add>, %16, %cst_9 [0] : vector<16x128xf32> to vector<128xf32>
    %19 = vector.shape_cast %18 : vector<128xf32> to vector<1x128xf32>
    %20 = arith.addf %17, %19 : vector<1x128xf32>
    %c0_10 = arith.constant 0 : index
    %c0_11 = arith.constant 0 : index
    %21 = vector.load %arg6[%c0_10, %c0_11] : memref<2x128xf32, #tpu.memory_space<vmem>>, vector<1x128xf32>
    tpu.vector_store %arg6[%c0_10, %c0_11], %20 {strides = array<i32>} : memref<2x128xf32, #tpu.memory_space<vmem>>, vector<1x128xf32>,
    %c1 = arith.constant 1 : index
    %c0_12 = arith.constant 0 : index
    %22 = vector.load %arg6[%c1, %c0_12] : memref<2x128xf32, #tpu.memory_space<vmem>>, vector<1x128xf32>
    %cst_13 = arith.constant dense<0.000000e+00> : vector<128xf32>
    %23 = vector.multi_reduction <add>, %5, %cst_13 [0] : vector<16x128xf32> to vector<128xf32>
    %24 = vector.shape_cast %23 : vector<128xf32> to vector<1x128xf32>
    %25 = arith.addf %22, %24 : vector<1x128xf32>
    %c1_14 = arith.constant 1 : index
    %c0_15 = arith.constant 0 : index
    %26 = vector.load %arg6[%c1_14, %c0_15] : memref<2x128xf32, #tpu.memory_space<vmem>>, vector<1x128xf32>
    tpu.vector_store %arg6[%c1_14, %c0_15], %25 {strides = array<i32>} : memref<2x128xf32, #tpu.memory_space<vmem>>, vector<1x128xf32>,
    %c0_i32_16 = arith.constant 0 : i32
    %27 = arith.cmpi eq, %arg1, %c0_i32_16 : i32
    %28 = arith.extui %27 : i1 to i32
    %c0_i32_17 = arith.constant 0 : i32
    %29 = arith.cmpi ne, %28, %c0_i32_17 : i32
    scf.if %29 {
      %c0_18 = arith.constant 0 : index
      %c0_19 = arith.constant 0 : index
      %30 = vector.load %arg6[%c0_18, %c0_19] : memref<2x128xf32, #tpu.memory_space<vmem>>, vector<2x128xf32>
      %c0_20 = arith.constant 0 : index
      %c0_21 = arith.constant 0 : index
      %c0_22 = arith.constant 0 : index
      %31 = vector.load %arg5[%c0_20, %c0_21, %c0_22] : memref<1x2x128xf32, #tpu.memory_space<vmem>>, vector<1x2x128xf32>
      %32 = vector.shape_cast %31 : vector<1x2x128xf32> to vector<2x128xf32>
      %33 = vector.shape_cast %30 : vector<2x128xf32> to vector<1x2x128xf32>
      tpu.vector_store %arg5[%c0_20, %c0_21, %c0_22], %33 {strides = array<i32>} : memref<1x2x128xf32, #tpu.memory_space<vmem>>, vector<1x2x128xf32>,
    } else {
    }
    return
  }
  func.func @transform_0(%arg0: i32, %arg1: i32) -> (i32, i32) {
    %c1_i32 = arith.constant 1 : i32
    %0 = arith.muli %arg0, %c1_i32 : i32
    %1 = arith.addi %0, %arg1 : i32
    %c0_i32 = arith.constant 0 : i32
    %2 = arith.minsi %1, %c0_i32 : i32
    %c0_i32_0 = arith.constant 0 : i32
    %c0_i32_1 = arith.constant 0 : i32
    return %2, %c0_i32_0 : i32, i32
  }
  func.func @transform_1(%arg0: i32, %arg1: i32) -> (i32, i32) {
    %c1_i32 = arith.constant 1 : i32
    %0 = arith.muli %arg0, %c1_i32 : i32
    %1 = arith.addi %0, %arg1 : i32
    %c0_i32 = arith.constant 0 : i32
    %2 = arith.minsi %1, %c0_i32 : i32
    %c0_i32_0 = arith.constant 0 : i32
    %c0_i32_1 = arith.constant 0 : i32
    return %2, %c0_i32_0 : i32, i32
  }
  func.func @transform_2(%arg0: i32, %arg1: i32) -> (i32, i32) {
    %c1_i32 = arith.constant 1 : i32
    %0 = arith.muli %arg0, %c1_i32 : i32
    %1 = arith.addi %0, %arg1 : i32
    %c0_i32 = arith.constant 0 : i32
    %2 = arith.minsi %1, %c0_i32 : i32
    %c0_i32_0 = arith.constant 0 : i32
    %c0_i32_1 = arith.constant 0 : i32
    return %2, %c0_i32_0 : i32, i32
  }
  func.func @transform_3(%arg0: i32, %arg1: i32) -> (i32, i32, i32) {
    %c0_i32 = arith.constant 0 : i32
    %c0_i32_0 = arith.constant 0 : i32
    %c0_i32_1 = arith.constant 0 : i32
    return %arg0, %c0_i32, %c0_i32_0 : i32, i32, i32
  }
}

</mosaic_0001>

<llo_original>
// kernel: weighted_bce_loss_2d.1
$region0: #{weighted_bce_loss_2d.1}
  #allocation0 [shape = 'u32[]', space=smem, size = 0x4, offset = 0x4, fixed_abs, tag = 'smem constant byte address 0x4 - core index']
  #allocation1 [shape = 'u32[144,128]{1,0:T(1,128)}', space=vmem, size = 0x12000, scoped, tag = 'internal scratch']
  #allocation2 [shape = 'f32[2,128]{1,0:T(2,128)}', space=vmem, size = 0x400, scoped, tag = 'scratch operand']
  %s0 = inlined_call_operand.vmem [shape: f32[16,128], index: 0, kind: input, shape index: {}]
  %s1 = inlined_call_operand.vmem [shape: f32[16,128], index: 1, kind: input, shape index: {}]
  %s2 = inlined_call_operand.vmem [shape: f32[16,128], index: 2, kind: input, shape index: {}]
  %s3 = inlined_call_operand.vmem [shape: f32[1,2,128], index: 3, kind: output, shape index: {}]
  %s4 = sld [smem:[#allocation0]]
  $region30: #{weighted_bce_loss_2d.1} parent=0
    _
  %s6 = ssub.s32 1, %s4
  %s7 = scalar_select 0, %s6, %s4
  // Predicated region
  $region2: #{weighted_bce_loss_2d.1} parent=0 // pred_check
    _
  $region3: #{weighted_bce_loss_2d.1} parent=0 // pred_check_branch
    %9 = sbr.rel (0) target = $region5
  $region4: #{weighted_bce_loss_2d.1} parent=0 // pred_region
    %s10 = sadd.s32 0, 0
    %p11 = scmp.lt.s32.totalorder %s10, 0
    %s12 = scalar_select %p11, %s10, 0
    %s13 = smul.u32 2, %s12
    %p14 = scmp.lt.s32.totalorder %s13, 1
    %s15 = scalar_select %p14, %s13, 1
    %s16 = smul.addr %s15, 8
    %s17 = scalar_lea.vmem %s0, %s16
    %s18 = sadd.s32 0, 0
    %p19 = scmp.lt.s32.totalorder %s18, 0
    %s20 = scalar_select %p19, %s18, 0
    %s21 = smul.u32 2, %s20
  $region5: #{weighted_bce_loss_2d.1} parent=0 // pred_fallthru
    _
  // Predicated region
  $region6: #{weighted_bce_loss_2d.1} parent=0 // pred_check
    _
  $region7: #{weighted_bce_loss_2d.1} parent=0 // pred_check_branch
    %23 = sbr.rel (0) target = $region9
  $region8: #{weighted_bce_loss_2d.1} parent=0 // pred_region
    %s24 = sadd.s32 0, 0
    %p25 = scmp.lt.s32.totalorder %s24, 0
    %s26 = scalar_select %p25, %s24, 0
    %s27 = smul.u32 2, %s26
    %p28 = scmp.lt.s32.totalorder %s27, 1
    %s29 = scalar_select %p28, %s27, 1
    %s30 = smul.addr %s29, 8
    %s31 = scalar_lea.vmem %s1, %s30
    %s32 = sadd.s32 0, 0
    %p33 = scmp.lt.s32.totalorder %s32, 0
    %s34 = scalar_select %p33, %s32, 0
    %s35 = smul.u32 2, %s34
  $region9: #{weighted_bce_loss_2d.1} parent=0 // pred_fallthru
    _
  // Predicated region
  $region10: #{weighted_bce_loss_2d.1} parent=0 // pred_check
    _
  $region11: #{weighted_bce_loss_2d.1} parent=0 // pred_check_branch
    %37 = sbr.rel (0) target = $region13
  $region12: #{weighted_bce_loss_2d.1} parent=0 // pred_region
    %s38 = sadd.s32 0, 0
    %p39 = scmp.lt.s32.totalorder %s38, 0
    %s40 = scalar_select %p39, %s38, 0
    %s41 = smul.u32 2, %s40
    %p42 = scmp.lt.s32.totalorder %s41, 1
    %s43 = scalar_select %p42, %s41, 1
    %s44 = smul.addr %s43, 8
    %s45 = scalar_lea.vmem %s2, %s44
    %s46 = sadd.s32 0, 0
    %p47 = scmp.lt.s32.totalorder %s46, 0
    %s48 = scalar_select %p47, %s46, 0
    %s49 = smul.u32 2, %s48
  $region13: #{weighted_bce_loss_2d.1} parent=0 // pred_fallthru
    _
  %s50 = sadd.s32 0, 0
  %p51 = scmp.lt.s32.totalorder %s50, 0
  %s52 = scalar_select %p51, %s50, 0
  %s53 = smul.u32 2, %s52
  %p54 = scmp.lt.s32.totalorder %s53, 1
  %s55 = scalar_select %p54, %s53, 1
  %s56 = smul.addr %s55, 8
  %s57 = scalar_lea.vmem %s0, %s56
  %s58 = sadd.s32 0, 0
  %p59 = scmp.lt.s32.totalorder %s58, 0
  %s60 = scalar_select %p59, %s58, 0
  %s61 = smul.u32 2, %s60
  %p62 = scmp.lt.s32.totalorder %s61, 1
  %s63 = scalar_select %p62, %s61, 1
  %s64 = smul.addr %s63, 8
  %s65 = scalar_lea.vmem %s1, %s64
  %s66 = sadd.s32 0, 0
  %p67 = scmp.lt.s32.totalorder %s66, 0
  %s68 = scalar_select %p67, %s66, 0
  %s69 = smul.u32 2, %s68
  %p70 = scmp.lt.s32.totalorder %s69, 1
  %s71 = scalar_select %p70, %s69, 1
  %s72 = smul.addr %s71, 8
  %s73 = scalar_lea.vmem %s2, %s72
  %s74 = sadd.s32 0, 0
  %p75 = scmp.lt.s32.totalorder %s74, 0
  %s76 = scalar_select %p75, %s74, 0
  %s77 = smul.u32 2, %s76
  %p78 = scmp.lt.s32.totalorder %s77, 1
  %s79 = scalar_select %p78, %s77, 1
  %s80 = smul.addr %s79, 8
  %s81 = scalar_lea.vmem %s0, %s80
  %s82 = sadd.s32 0, 0
  %p83 = scmp.lt.s32.totalorder %s82, 0
  %s84 = scalar_select %p83, %s82, 0
  %s85 = smul.u32 2, %s84
  %s86 = sadd.s32 0, 0
  %p87 = scmp.lt.s32.totalorder %s86, 0
  %s88 = scalar_select %p87, %s86, 0
  %s89 = smul.u32 2, %s88
  %p90 = scmp.lt.s32.totalorder %s89, 1
  %s91 = scalar_select %p90, %s89, 1
  %s92 = smul.addr %s91, 8
  %s93 = scalar_lea.vmem %s1, %s92
  %s94 = sadd.s32 0, 0
  %p95 = scmp.lt.s32.totalorder %s94, 0
  %s96 = scalar_select %p95, %s94, 0
  %s97 = smul.u32 2, %s96
  %s98 = sadd.s32 0, 0
  %p99 = scmp.lt.s32.totalorder %s98, 0
  %s100 = scalar_select %p99, %s98, 0
  %s101 = smul.u32 2, %s100
  %p102 = scmp.lt.s32.totalorder %s101, 1
  %s103 = scalar_select %p102, %s101, 1
  %s104 = smul.addr %s103, 8
  %s105 = scalar_lea.vmem %s2, %s104
  %s106 = sadd.s32 0, 0
  %p107 = scmp.lt.s32.totalorder %s106, 0
  %s108 = scalar_select %p107, %s106, 0
  %s109 = smul.u32 2, %s108
  %p110 = scmp.eq.s32.totalorder 0, 0
  // Predicated region
  $region14: #{weighted_bce_loss_2d.1} parent=0 // pred_check
    %p111 = pneg %p110
  $region15: #{weighted_bce_loss_2d.1} parent=0 // pred_check_branch
    %113 = sbr.rel (%p111) target = $region17
  $region16: #{weighted_bce_loss_2d.1} parent=0 // pred_region
    %114 = vst [vmem:[#allocation2] sm:$0x3] 0.0
  $region17: #{weighted_bce_loss_2d.1} parent=0 // pred_fallthru
    _
  %v115 = vld [vmem:[%s81] sm:$0xff]
  %v116 = vld [vmem:[%s81 + $0x8] sm:$0xff]
  %v117 = vld [vmem:[%s93] sm:$0xff]
  %v118 = vld [vmem:[%s93 + $0x8] sm:$0xff]
  %v119 = vld [vmem:[%s105] sm:$0xff]
  %v120 = vld [vmem:[%s105 + $0x8] sm:$0xff]
  %v121 = vmax.f32 %v115, 0.0
  %v122 = vmax.f32 %v116, 0.0
  %v123 = vmul.f32 %v115, %v117
  %v124 = vmul.f32 %v116, %v118
  %v125 = vsub.f32 %v121, %v123
  %v126 = vsub.f32 %v122, %v124
  %v127 = vand.u32 2147483647, %v115
  %v128 = vand.u32 2147483647, %v116
  %v129 = vsub.f32 0.0, %v127
  %v130 = vsub.f32 0.0, %v128
  %v131 = vmul.f32 %v129, 1.442695
  %v132 = vpow.pop %v131
  %v133 = vmul.f32 %v130, 1.442695
  %v134 = vpow.pop %v133
  %v135 = vadd.f32 %v132, 1.0
  %v136 = vlog2.pop %v135
  %v137 = vmul.f32 %v136, 0.6931472
  %v138 = vmul.f32 -0.5, %v132
  %v139 = vadd.f32 %v138, 1.0
  %v140 = vmul.f32 %v139, %v132
  %v141 = vand.u32 2147483647, %v132
  %vm142 = vcmp.lt.f32.partialorder %v141, 0.0004427343
  %v143 = vsel %vm142, %v140, %v137
  %v144 = vadd.f32 %v134, 1.0
  %v145 = vlog2.pop %v144
  %v146 = vmul.f32 %v145, 0.6931472
  %v147 = vmul.f32 -0.5, %v134
  %v148 = vadd.f32 %v147, 1.0
  %v149 = vmul.f32 %v148, %v134
  %v150 = vand.u32 2147483647, %v134
  %vm151 = vcmp.lt.f32.partialorder %v150, 0.0004427343
  %v152 = vsel %vm151, %v149, %v146
  %v153 = vadd.f32 %v125, %v143
  %v154 = vadd.f32 %v126, %v152
  %v155 = vmul.f32 %v153, %v119
  %v156 = vmul.f32 %v154, %v120
  %v157 = vld [vmem:[#allocation2] sm:$0x1]
  %v158 = vadd.f32 %v155, %v156
  %v159 = vrot.slane %v158, 4
  %v160 = vadd.f32 %v158, %v159
  %v161 = vrot.slane %v160, 2
  %v162 = vadd.f32 %v160, %v161
  %v163 = vrot.slane %v162, 1
  %v164 = vadd.f32 %v162, %v163
  %v165 = vadd.f32 %v157, %v164
  %166 = vst [vmem:[#allocation2] sm:$0x1] %v165
  %v167 = vld [vmem:[#allocation2 + $0x1] sm:$0x1]
  %v168 = vadd.f32 %v119, %v120
  %v169 = vrot.slane %v168, 4
  %v170 = vadd.f32 %v168, %v169
  %v171 = vrot.slane %v170, 2
  %v172 = vadd.f32 %v170, %v171
  %v173 = vrot.slane %v172, 1
  %v174 = vadd.f32 %v172, %v173
  %v175 = vadd.f32 %v167, %v174
  %176 = vst [vmem:[#allocation2 + $0x1] sm:$0x1] %v175
  // Predicated region
  $region18: #{weighted_bce_loss_2d.1} parent=0 // pred_check
    %p177 = pneg %p110
  $region19: #{weighted_bce_loss_2d.1} parent=0 // pred_check_branch
    %179 = sbr.rel (%p177) target = $region21
  $region20: #{weighted_bce_loss_2d.1} parent=0 // pred_region
    %v180 = vld [vmem:[#allocation2] sm:$0x3]
    %181 = vst [vmem:[%s3] sm:$0x3] %v180
  $region21: #{weighted_bce_loss_2d.1} parent=0 // pred_fallthru
    _
  // Predicated region
  $region22: #{weighted_bce_loss_2d.1} parent=0 // pred_check
    _
  $region23: #{weighted_bce_loss_2d.1} parent=0 // pred_check_branch
    %183 = sbr.rel (0) target = $region25
  $region24: #{weighted_bce_loss_2d.1} parent=0 // pred_region
    _
  $region25: #{weighted_bce_loss_2d.1} parent=0 // pred_fallthru
    _
  // Predicated region
  $region26: #{weighted_bce_loss_2d.1} parent=0 // pred_check
    _
  $region27: #{weighted_bce_loss_2d.1} parent=0 // pred_check_branch
    %185 = sbr.rel (0) target = $region29
  $region28: #{weighted_bce_loss_2d.1} parent=0 // pred_region
    _
  $region29: #{weighted_bce_loss_2d.1} parent=0 // pred_fallthru
    _

</llo_original>
